<compile_context>
chip_gen: v6e
topology: v6e:2x2x1
jax: 0.10.0
libtpu: 0.0.40
codegen_flags: <defaults>
</compile_context>

<pallas_src>
import jax
import jax.numpy as jnp
import numpy as np
from jax import lax
from jax.experimental import pallas as pl
from jax.experimental.pallas import tpu as pltpu

VMEM_BUDGET = 48 * 1024 * 1024  # fits v7x's 64 MiB physical, > default scoped on v5e/v6e


def _full_spec(shape):
    """BlockSpec covering a whole (small) array, constant across the grid."""
    zeros = tuple(0 for _ in shape)
    return pl.BlockSpec(shape, lambda *_: zeros)


def _pick_tile(n, target):
    for t in (target, 1024, 512, 256, 128, 64, 32, 16, 8):
        if t <= n and n % t == 0:
            return t
    return n


# --------------------------------------------------------------------------- #
# Kernel 1: key / value projections (computed once per spatial position).
# --------------------------------------------------------------------------- #
def kv_project_kernel(x_ref, kg_ref, vg_ref,
                      wk1x_ref, bk1_ref, wk2_ref, bk2_ref,
                      wvx_ref, bv_ref,
                      k_out_ref, v_out_ref):
    x = x_ref[0]                                                    # (TK, C) bf16

    # key_project on concat([x_global, x]) : global half is the precomputed kg row.
    k = jnp.dot(x, wk1x_ref[...], preferred_element_type=jnp.float32)
    k = k + kg_ref[0] + bk1_ref[...]                                # f32
    k = jnp.dot(k.astype(jnp.bfloat16), wk2_ref[...],
                preferred_element_type=jnp.float32) + bk2_ref[...]

    # value_project on concat([x_global, x]) : single 1x1 conv.
    v = jnp.dot(x, wvx_ref[...], preferred_element_type=jnp.float32)
    v = v + vg_ref[0] + bv_ref[...]

    k_out_ref[0] = k.astype(k_out_ref.dtype)
    v_out_ref[0] = v.astype(v_out_ref.dtype)


# --------------------------------------------------------------------------- #
# Kernel 2: query projection + flash attention (online softmax) + out projection.
# --------------------------------------------------------------------------- #
def flash_attn_kernel(xq_ref, k_ref, v_ref,
                      wq1_ref, bq1_ref, wq2_ref, bq2_ref,
                      wo_ref, bo_ref,
                      out_ref,
                      q_sc, m_sc, l_sc, acc_sc):
    ki = pl.program_id(2)

    @pl.when(ki == 0)
    def _init():
        # query_project (two 1x1 convs), computed once per query tile.
        xq = xq_ref[0]                                              # (TQ, C) bf16
        q = jnp.dot(xq, wq1_ref[...], preferred_element_type=jnp.float32) + bq1_ref[...]
        q = jnp.dot(q.astype(jnp.bfloat16), wq2_ref[...],
                    preferred_element_type=jnp.float32) + bq2_ref[...]
        scale = q.shape[-1] ** -0.5                                 # matmul_norm temperature
        q_sc[...] = (q * scale).astype(jnp.bfloat16)
        m_sc[...] = jnp.full(m_sc.shape, -jnp.inf, dtype=jnp.float32)
        l_sc[...] = jnp.zeros(l_sc.shape, dtype=jnp.float32)
        acc_sc[...] = jnp.zeros(acc_sc.shape, dtype=jnp.float32)

    k = k_ref[0]                                                    # (TK, T) bf16
    v = v_ref[0]                                                    # (TK, T) bf16

    # sim = q @ k^T without materializing a transpose of k.
    sim = lax.dot_general(q_sc[...], k,
                          dimension_numbers=(((1,), (1,)), ((), ())),
                          preferred_element_type=jnp.float32)       # (TQ, TK) f32

    # Online softmax update (all stats in f32).
    m_new = jnp.maximum(m_sc[...], jnp.max(sim, axis=-1, keepdims=True))
    alpha = jnp.exp(m_sc[...] - m_new)
    p = jnp.exp(sim - m_new)
    l_sc[...] = alpha * l_sc[...] + jnp.sum(p, axis=-1, keepdims=True)
    acc_sc[...] = alpha * acc_sc[...] + jnp.dot(
        p.astype(jnp.bfloat16), v, preferred_element_type=jnp.float32)
    m_sc[...] = m_new

    @pl.when(ki == pl.num_programs(2) - 1)
    def _finalize():
        ctx = acc_sc[...] * pl.reciprocal(l_sc[...], approx=True)   # (TQ, T) f32
        out = jnp.dot(ctx.astype(jnp.bfloat16), wo_ref[...],
                      preferred_element_type=jnp.float32) + bo_ref[...]
        out_ref[0] = out.astype(out_ref.dtype)


# --------------------------------------------------------------------------- #
# Wrapper (layout glue + the tiny global-pool projections).
# --------------------------------------------------------------------------- #
def image_level_context(x_nchw, params, *, tq=None, tk=None):
    """x_nchw: (B, C, H, W) float32. Returns (B, C, H, W) float32."""
    B, C, H, W = x_nchw.shape
    HW = H * W
    T = params["wq1"].shape[1]

    # NCHW -> (B, HW, C). Global avg-pool (+ 1x1 bilinear resize == broadcast) in f32,
    # folded into the key/value projections' "global" halves.
    x_flat32 = jnp.transpose(x_nchw, (0, 2, 3, 1)).reshape(B, HW, C)
    g = jnp.mean(x_flat32, axis=1)                                  # (B, C)
    kg = (g @ params["wk1g"]).reshape(B, 1, T).astype(jnp.float32)
    vg = (g @ params["wvg"]).reshape(B, 1, T).astype(jnp.float32)

    x_flat = x_flat32.astype(jnp.bfloat16)                          # bf16 MXU operand

    tq = _pick_tile(HW, tq or 512)
    tk = _pick_tile(HW, tk or 512)
    nq, nk = HW // tq, HW // tk

    bf = lambda n: params[n].astype(jnp.bfloat16)
    f32 = lambda n: params[n].astype(jnp.float32)

    def wbytes(ws):
        return sum(int(np.prod(w.shape)) * w.dtype.itemsize for w in ws)

    # --------------------- K / V projection kernel --------------------- #
    kv_weights = (bf("wk1x"), f32("bk1"), bf("wk2"), f32("bk2"), bf("wvx"), f32("bv"))
    # NOTE: weight blocks use a constant index_map; they are small relative to the
    # activation tiles so default buffering is acceptable here.
    kv_in_specs = (
        [pl.BlockSpec((1, tk, C), lambda b, s: (b, s, 0)),
         pl.BlockSpec((1, 1, T), lambda b, s: (b, 0, 0)),
         pl.BlockSpec((1, 1, T), lambda b, s: (b, 0, 0))]
        + [_full_spec(w.shape) for w in kv_weights])
    kv_cost = pl.CostEstimate(
        flops=int(B * HW * (4 * C * T + 2 * T * T)),
        transcendentals=0,
        bytes_accessed=int(B * HW * C * 2 + 2 * B * HW * T * 2
                           + 2 * B * T * 4 + wbytes(kv_weights)))

    k_arr, v_arr = pl.pallas_call(
        kv_project_kernel,
        out_shape=(jax.ShapeDtypeStruct((B, HW, T), jnp.bfloat16),
                   jax.ShapeDtypeStruct((B, HW, T), jnp.bfloat16)),
        grid_spec=pltpu.PrefetchScalarGridSpec(
            num_scalar_prefetch=0,
            grid=(B, nk),
            in_specs=kv_in_specs,
            out_specs=[pl.BlockSpec((1, tk, T), lambda b, s: (b, s, 0)),
                       pl.BlockSpec((1, tk, T), lambda b, s: (b, s, 0))],
        ),
        compiler_params=pltpu.CompilerParams(
            dimension_semantics=("parallel", "parallel"),
            vmem_limit_bytes=VMEM_BUDGET),
        cost_estimate=kv_cost,
    )(x_flat, kg, vg, *kv_weights)

    # --------------------- flash attention kernel ---------------------- #
    attn_weights = (bf("wq1"), f32("bq1"), bf("wq2"), f32("bq2"), bf("wo"), f32("bo"))
    attn_in_specs = (
        [pl.BlockSpec((1, tq, C), lambda b, qi, ki: (b, qi, 0)),
         pl.BlockSpec((1, tk, T), lambda b, qi, ki: (b, ki, 0)),
         pl.BlockSpec((1, tk, T), lambda b, qi, ki: (b, ki, 0))]
        + [_full_spec(w.shape) for w in attn_weights])
    attn_cost = pl.CostEstimate(
        flops=int(B * (2 * HW * C * T + 2 * HW * T * T
                       + 4 * HW * HW * T + 2 * HW * T * C)),
        transcendentals=int(B * HW * HW + B * HW),
        bytes_accessed=int(B * HW * C * 2            # x (bf16) read
                           + B * nq * HW * T * 2 * 2  # K, V re-read per query tile
                           + B * HW * C * 4           # f32 output write
                           + wbytes(attn_weights)))

    out_flat = pl.pallas_call(
        flash_attn_kernel,
        out_shape=jax.ShapeDtypeStruct((B, HW, C), jnp.float32),
        grid_spec=pltpu.PrefetchScalarGridSpec(
            num_scalar_prefetch=0,
            grid=(B, nq, nk),
            in_specs=attn_in_specs,
            out_specs=pl.BlockSpec((1, tq, C), lambda b, qi, ki: (b, qi, 0)),
            scratch_shapes=[pltpu.VMEM((tq, T), jnp.bfloat16),   # cached (scaled) q tile
                            pltpu.VMEM((tq, 1), jnp.float32),    # running max
                            pltpu.VMEM((tq, 1), jnp.float32),    # running sum
                            pltpu.VMEM((tq, T), jnp.float32)],   # f32 accumulator
        ),
        compiler_params=pltpu.CompilerParams(
            dimension_semantics=("parallel", "parallel", "arbitrary"),
            vmem_limit_bytes=VMEM_BUDGET),
        cost_estimate=attn_cost,
    )(x_flat, k_arr, v_arr, *attn_weights)

    # (B, HW, C) -> NCHW
    return jnp.transpose(out_flat.reshape(B, H, W, C), (0, 3, 1, 2))


# --------------------------------------------------------------------------- #
# Synthetic parameters and a pure-JAX (f32) reference.
# --------------------------------------------------------------------------- #
def make_params(key, feats_channels, transform_channels):
    C, T = feats_channels, transform_channels
    ks = jax.random.split(key, 16)
    s = 0.1
    return {
        # query_project: C -> T -> T
        "wq1": s * jax.random.normal(ks[0], (C, T), jnp.float32),
        "bq1": s * jax.random.normal(ks[1], (1, T), jnp.float32),
        "wq2": s * jax.random.normal(ks[2], (T, T), jnp.float32),
        "bq2": s * jax.random.normal(ks[3], (1, T), jnp.float32),
        # key_project: 2C -> T -> T  (split rows: global half / x half)
        "wk1g": s * jax.random.normal(ks[4], (C, T), jnp.float32),
        "wk1x": s * jax.random.normal(ks[5], (C, T), jnp.float32),
        "bk1": s * jax.random.normal(ks[6], (1, T), jnp.float32),
        "wk2": s * jax.random.normal(ks[7], (T, T), jnp.float32),
        "bk2": s * jax.random.normal(ks[8], (1, T), jnp.float32),
        # value_project: 2C -> T
        "wvg": s * jax.random.normal(ks[9], (C, T), jnp.float32),
        "wvx": s * jax.random.normal(ks[10], (C, T), jnp.float32),
        "bv": s * jax.random.normal(ks[11], (1, T), jnp.float32),
        # out_project: T -> C
        "wo": s * jax.random.normal(ks[12], (T, C), jnp.float32),
        "bo": s * jax.random.normal(ks[13], (1, C), jnp.float32),
    }


def reference_forward(x_nchw, params):
    """Pure-JAX f32 reference mirroring the PyTorch forward (default cfg)."""
    B, C, H, W = x_nchw.shape
    T = params["wq1"].shape[1]
    x = jnp.transpose(x_nchw, (0, 2, 3, 1)).reshape(B, H * W, C)
    g = jnp.mean(x, axis=1, keepdims=True)
    key_in = jnp.concatenate([jnp.broadcast_to(g, x.shape), x], axis=-1)

    q = x @ params["wq1"] + params["bq1"]
    q = q @ params["wq2"] + params["bq2"]
    wk1 = jnp.concatenate([params["wk1g"], params["wk1x"]], axis=0)
    k = key_in @ wk1 + params["bk1"]
    k = k @ params["wk2"] + params["bk2"]
    wv = jnp.concatenate([params["wvg"], params["wvx"]], axis=0)
    v = key_in @ wv + params["bv"]

    sim = jnp.einsum("bnt,bmt->bnm", q, k) * (T ** -0.5)
    sim = jax.nn.softmax(sim, axis=-1)
    ctx = jnp.einsum("bnm,bmt->bnt", sim, v)
    out = ctx @ params["wo"] + params["bo"]
    return jnp.transpose(out.reshape(B, H, W, C), (0, 3, 1, 2))


if __name__ == "__main__":
    # Small shapes: batch=2, feats_channels=8, H=W=16 (HW=256), transform_channels=32.
    # tq=tk=64 -> a (2, 4, 4) grid, exercising the multi-tile online-softmax path.
    B, C, H, W = 2, 8, 16, 16
    T = 32

    key = jax.random.PRNGKey(0)
    kx, kp = jax.random.split(key)
    x = jax.random.normal(kx, (B, C, H, W), jnp.float32)
    params = make_params(kp, C, T)

    out = image_level_context(x, params, tq=64, tk=64)
    out = jax.block_until_ready(out)

    ref = reference_forward(x, params)
    # bf16 MXU operands + approx reciprocal => slightly loosened tolerance.
    np.testing.assert_allclose(np.asarray(out, dtype=np.float32), np.asarray(ref),
                               rtol=2e-2, atol=2e-2)

    print("KERNEL_OK")
</pallas_src>

<mosaic_0001>
module attributes {stable_mosaic.version = 11 : i64} {
  func.func @kv_project_kernel(%arg0: i32, %arg1: i32, %arg2: memref<1x64x8xbf16, #tpu.memory_space<vmem>>, %arg3: memref<1x1x32xf32, #tpu.memory_space<vmem>>, %arg4: memref<1x1x32xf32, #tpu.memory_space<vmem>>, %arg5: memref<8x32xbf16, #tpu.memory_space<vmem>>, %arg6: memref<1x32xf32, #tpu.memory_space<vmem>>, %arg7: memref<32x32xbf16, #tpu.memory_space<vmem>>, %arg8: memref<1x32xf32, #tpu.memory_space<vmem>>, %arg9: memref<8x32xbf16, #tpu.memory_space<vmem>>, %arg10: memref<1x32xf32, #tpu.memory_space<vmem>>, %arg11: memref<1x64x32xbf16, #tpu.memory_space<vmem>>, %arg12: memref<1x64x32xbf16, #tpu.memory_space<vmem>>) attributes {dimension_semantics = [#tpu.dimension_semantics<parallel>, #tpu.dimension_semantics<parallel>], iteration_bounds = array<i64: 2, 4>, scalar_prefetch = 0 : i64, scratch_operands = 0 : i64, tpu.core_type = #tpu.core_type<tc>, window_params = [{transform_indices = @transform_0, window_bounds = array<i64: 1, 64, 8>}, {transform_indices = @transform_1, window_bounds = array<i64: 1, 1, 32>}, {transform_indices = @transform_2, window_bounds = array<i64: 1, 1, 32>}, {pipeline_mode = #tpu.pipeline_mode<synchronous>, transform_indices = @transform_3, window_bounds = array<i64: 8, 32>}, {pipeline_mode = #tpu.pipeline_mode<synchronous>, transform_indices = @transform_4, window_bounds = array<i64: 1, 32>}, {pipeline_mode = #tpu.pipeline_mode<synchronous>, transform_indices = @transform_5, window_bounds = array<i64: 32, 32>}, {pipeline_mode = #tpu.pipeline_mode<synchronous>, transform_indices = @transform_6, window_bounds = array<i64: 1, 32>}, {pipeline_mode = #tpu.pipeline_mode<synchronous>, transform_indices = @transform_7, window_bounds = array<i64: 8, 32>}, {pipeline_mode = #tpu.pipeline_mode<synchronous>, transform_indices = @transform_8, window_bounds = array<i64: 1, 32>}, {transform_indices = @transform_9, window_bounds = array<i64: 1, 64, 32>}, {transform_indices = @transform_10, window_bounds = array<i64: 1, 64, 32>}]} {
    %c0 = arith.constant 0 : index
    %c0_0 = arith.constant 0 : index
    %c0_1 = arith.constant 0 : index
    %0 = vector.load %arg2[%c0, %c0_0, %c0_1] : memref<1x64x8xbf16, #tpu.memory_space<vmem>>, vector<1x64x8xbf16>
    %1 = vector.shape_cast %0 : vector<1x64x8xbf16> to vector<64x8xbf16>
    %c0_2 = arith.constant 0 : index
    %c0_3 = arith.constant 0 : index
    %2 = vector.load %arg5[%c0_2, %c0_3] : memref<8x32xbf16, #tpu.memory_space<vmem>>, vector<8x32xbf16>
    %cst = arith.constant dense<0.000000e+00> : vector<64x32xf32>
    %3 = tpu.matmul %1, %2, %cst {dimension_numbers = #tpu.dot_dimension_numbers<[1], [0], [0], [1], [0, 0, 1, 1], [], []>} : vector<64x8xbf16>, vector<8x32xbf16>, vector<64x32xf32> -> vector<64x32xf32>
    %c0_4 = arith.constant 0 : index
    %c0_5 = arith.constant 0 : index
    %c0_6 = arith.constant 0 : index
    %4 = vector.load %arg3[%c0_4, %c0_5, %c0_6] : memref<1x1x32xf32, #tpu.memory_space<vmem>>, vector<1x1x32xf32>
    %5 = vector.shape_cast %4 : vector<1x1x32xf32> to vector<1x32xf32>
    %6 = vector.broadcast %5 : vector<1x32xf32> to vector<64x32xf32>
    %7 = arith.addf %3, %6 : vector<64x32xf32>
    %c0_7 = arith.constant 0 : index
    %c0_8 = arith.constant 0 : index
    %8 = vector.load %arg6[%c0_7, %c0_8] : memref<1x32xf32, #tpu.memory_space<vmem>>, vector<1x32xf32>
    %9 = vector.broadcast %8 : vector<1x32xf32> to vector<64x32xf32>
    %10 = arith.addf %7, %9 : vector<64x32xf32>
    %11 = arith.truncf %10 : vector<64x32xf32> to vector<64x32xbf16>
    %c0_9 = arith.constant 0 : index
    %c0_10 = arith.constant 0 : index
    %12 = vector.load %arg7[%c0_9, %c0_10] : memref<32x32xbf16, #tpu.memory_space<vmem>>, vector<32x32xbf16>
    %cst_11 = arith.constant dense<0.000000e+00> : vector<64x32xf32>
    %13 = tpu.matmul %11, %12, %cst_11 {dimension_numbers = #tpu.dot_dimension_numbers<[1], [0], [0], [1], [0, 0, 1, 1], [], []>} : vector<64x32xbf16>, vector<32x32xbf16>, vector<64x32xf32> -> vector<64x32xf32>
    %c0_12 = arith.constant 0 : index
    %c0_13 = arith.constant 0 : index
    %14 = vector.load %arg8[%c0_12, %c0_13] : memref<1x32xf32, #tpu.memory_space<vmem>>, vector<1x32xf32>
    %15 = vector.broadcast %14 : vector<1x32xf32> to vector<64x32xf32>
    %16 = arith.addf %13, %15 : vector<64x32xf32>
    %c0_14 = arith.constant 0 : index
    %c0_15 = arith.constant 0 : index
    %17 = vector.load %arg9[%c0_14, %c0_15] : memref<8x32xbf16, #tpu.memory_space<vmem>>, vector<8x32xbf16>
    %cst_16 = arith.constant dense<0.000000e+00> : vector<64x32xf32>
    %18 = tpu.matmul %1, %17, %cst_16 {dimension_numbers = #tpu.dot_dimension_numbers<[1], [0], [0], [1], [0, 0, 1, 1], [], []>} : vector<64x8xbf16>, vector<8x32xbf16>, vector<64x32xf32> -> vector<64x32xf32>
    %c0_17 = arith.constant 0 : index
    %c0_18 = arith.constant 0 : index
    %c0_19 = arith.constant 0 : index
    %19 = vector.load %arg4[%c0_17, %c0_18, %c0_19] : memref<1x1x32xf32, #tpu.memory_space<vmem>>, vector<1x1x32xf32>
    %20 = vector.shape_cast %19 : vector<1x1x32xf32> to vector<1x32xf32>
    %21 = vector.broadcast %20 : vector<1x32xf32> to vector<64x32xf32>
    %22 = arith.addf %18, %21 : vector<64x32xf32>
    %c0_20 = arith.constant 0 : index
    %c0_21 = arith.constant 0 : index
    %23 = vector.load %arg10[%c0_20, %c0_21] : memref<1x32xf32, #tpu.memory_space<vmem>>, vector<1x32xf32>
    %24 = vector.broadcast %23 : vector<1x32xf32> to vector<64x32xf32>
    %25 = arith.addf %22, %24 : vector<64x32xf32>
    %26 = arith.truncf %16 : vector<64x32xf32> to vector<64x32xbf16>
    %c0_22 = arith.constant 0 : index
    %c0_23 = arith.constant 0 : index
    %c0_24 = arith.constant 0 : index
    %27 = vector.load %arg11[%c0_22, %c0_23, %c0_24] : memref<1x64x32xbf16, #tpu.memory_space<vmem>>, vector<1x64x32xbf16>
    %28 = vector.shape_cast %27 : vector<1x64x32xbf16> to vector<64x32xbf16>
    %29 = vector.shape_cast %26 : vector<64x32xbf16> to vector<1x64x32xbf16>
    tpu.vector_store %arg11[%c0_22, %c0_23, %c0_24], %29 {strides = array<i32>} : memref<1x64x32xbf16, #tpu.memory_space<vmem>>, vector<1x64x32xbf16>,
    %30 = arith.truncf %25 : vector<64x32xf32> to vector<64x32xbf16>
    %c0_25 = arith.constant 0 : index
    %c0_26 = arith.constant 0 : index
    %c0_27 = arith.constant 0 : index
    %31 = vector.load %arg12[%c0_25, %c0_26, %c0_27] : memref<1x64x32xbf16, #tpu.memory_space<vmem>>, vector<1x64x32xbf16>
    %32 = vector.shape_cast %31 : vector<1x64x32xbf16> to vector<64x32xbf16>
    %33 = vector.shape_cast %30 : vector<64x32xbf16> to vector<1x64x32xbf16>
    tpu.vector_store %arg12[%c0_25, %c0_26, %c0_27], %33 {strides = array<i32>} : memref<1x64x32xbf16, #tpu.memory_space<vmem>>, vector<1x64x32xbf16>,
    return
  }
  func.func @transform_0(%arg0: i32, %arg1: i32) -> (i32, i32, i32) {
    %c0_i32 = arith.constant 0 : i32
    %c0_i32_0 = arith.constant 0 : i32
    return %arg0, %arg1, %c0_i32 : i32, i32, i32
  }
  func.func @transform_1(%arg0: i32, %arg1: i32) -> (i32, i32, i32) {
    %c0_i32 = arith.constant 0 : i32
    %c0_i32_0 = arith.constant 0 : i32
    %c0_i32_1 = arith.constant 0 : i32
    return %arg0, %c0_i32, %c0_i32_0 : i32, i32, i32
  }
  func.func @transform_2(%arg0: i32, %arg1: i32) -> (i32, i32, i32) {
    %c0_i32 = arith.constant 0 : i32
    %c0_i32_0 = arith.constant 0 : i32
    %c0_i32_1 = arith.constant 0 : i32
    return %arg0, %c0_i32, %c0_i32_0 : i32, i32, i32
  }
  func.func @transform_3(%arg0: i32, %arg1: i32) -> (i32, i32) {
    %c0_i32 = arith.constant 0 : i32
    %c0_i32_0 = arith.constant 0 : i32
    %c0_i32_1 = arith.constant 0 : i32
    return %c0_i32, %c0_i32_0 : i32, i32
  }
  func.func @transform_4(%arg0: i32, %arg1: i32) -> (i32, i32) {
    %c0_i32 = arith.constant 0 : i32
    %c0_i32_0 = arith.constant 0 : i32
    %c0_i32_1 = arith.constant 0 : i32
    return %c0_i32, %c0_i32_0 : i32, i32
  }
  func.func @transform_5(%arg0: i32, %arg1: i32) -> (i32, i32) {
    %c0_i32 = arith.constant 0 : i32
    %c0_i32_0 = arith.constant 0 : i32
    %c0_i32_1 = arith.constant 0 : i32
    return %c0_i32, %c0_i32_0 : i32, i32
  }
  func.func @transform_6(%arg0: i32, %arg1: i32) -> (i32, i32) {
    %c0_i32 = arith.constant 0 : i32
    %c0_i32_0 = arith.constant 0 : i32
    %c0_i32_1 = arith.constant 0 : i32
    return %c0_i32, %c0_i32_0 : i32, i32
  }
  func.func @transform_7(%arg0: i32, %arg1: i32) -> (i32, i32) {
    %c0_i32 = arith.constant 0 : i32
    %c0_i32_0 = arith.constant 0 : i32
    %c0_i32_1 = arith.constant 0 : i32
    return %c0_i32, %c0_i32_0 : i32, i32
  }
  func.func @transform_8(%arg0: i32, %arg1: i32) -> (i32, i32) {
    %c0_i32 = arith.constant 0 : i32
    %c0_i32_0 = arith.constant 0 : i32
    %c0_i32_1 = arith.constant 0 : i32
    return %c0_i32, %c0_i32_0 : i32, i32
  }
  func.func @transform_9(%arg0: i32, %arg1: i32) -> (i32, i32, i32) {
    %c0_i32 = arith.constant 0 : i32
    %c0_i32_0 = arith.constant 0 : i32
    return %arg0, %arg1, %c0_i32 : i32, i32, i32
  }
  func.func @transform_10(%arg0: i32, %arg1: i32) -> (i32, i32, i32) {
    %c0_i32 = arith.constant 0 : i32
    %c0_i32_0 = arith.constant 0 : i32
    return %arg0, %arg1, %c0_i32 : i32, i32, i32
  }
}

</mosaic_0001>

<llo_original>
// kernel: tpu_custom_call.1
$region0: #{tpu_custom_call.1}
  #allocation0 [shape = 'u32[]', space=smem, size = 0x4, offset = 0x4, fixed_abs, tag = 'smem constant byte address 0x4 - core index']
  #allocation1 [shape = 'u32[144,128]{1,0:T(1,128)}', space=vmem, size = 0x12000, scoped, tag = 'internal scratch']
  %s0 = inlined_call_operand.vmem [shape: bf16[2,256,8], index: 0, kind: input, shape index: {}]
  %s1 = inlined_call_operand.vmem [shape: f32[2,1,32], index: 1, kind: input, shape index: {}]
  %s2 = inlined_call_operand.vmem [shape: f32[2,1,32], index: 2, kind: input, shape index: {}]
  %s3 = inlined_call_operand.vmem [shape: bf16[8,32], index: 3, kind: input, shape index: {}]
  %s4 = inlined_call_operand.vmem [shape: f32[1,32], index: 4, kind: input, shape index: {}]
  %s5 = inlined_call_operand.vmem [shape: bf16[32,32], index: 5, kind: input, shape index: {}]
  %s6 = inlined_call_operand.vmem [shape: f32[1,32], index: 6, kind: input, shape index: {}]
  %s7 = inlined_call_operand.vmem [shape: bf16[8,32], index: 7, kind: input, shape index: {}]
  %s8 = inlined_call_operand.vmem [shape: f32[1,32], index: 8, kind: input, shape index: {}]
  %s9 = inlined_call_operand.vmem [shape: bf16[2,256,32], index: 9, kind: output, shape index: {0}]
  %s10 = inlined_call_operand.vmem [shape: bf16[2,256,32], index: 10, kind: output, shape index: {1}]
  %11 = xla_tuple %s9, %s10
  %s12 = sld [smem:[#allocation0]]
  $region77: #{tpu_custom_call.1} parent=0
    _
  %s14 = ssub.s32 1, %s12
  %s15 = scalar_select 0, %s14, %s12
  loop: start=0, step=1, limit=10
  $region2: #{tpu_custom_call.1} parent=0 // loop_pre_header
    _
  $region3: #{tpu_custom_call.1} parent=0 // loop_header
    %s17 = sphi 0, %s21
    %p18 = scmp.ge.s32.totalorder %s17, 10
    %s24 = sphi 0, %s36
    %s25 = sphi 0, %s32
    %s26 = sphi 0, %s24
    %s27 = sphi 0, %s25
    %s28 = sphi 0, %s26
    %s29 = sphi 0, %s27
    %s41 = sphi 0, %s43
    %s44 = sphi 0, %s41
    %s45 = sphi 0, %s44
    %s61 = sphi 0, %s45
    %s67 = sphi 0, %s69
    %s70 = sphi 0, %s67
    %s71 = sphi 0, %s70
    %s87 = sphi 0, %s71
    %s93 = sphi 0, %s95
    %s96 = sphi 0, %s93
    %s97 = sphi 0, %s96
    %s113 = sphi 0, %s97
    %s117 = sphi 0, %s117
    %s119 = sphi 0, %s117
    %s120 = sphi 0, %s119
    %s134 = sphi 0, %s120
    %s138 = sphi 0, %s138
    %s140 = sphi 0, %s138
    %s141 = sphi 0, %s140
    %s155 = sphi 0, %s141
    %s159 = sphi 0, %s159
    %s161 = sphi 0, %s159
    %s162 = sphi 0, %s161
    %s176 = sphi 0, %s162
    %s180 = sphi 0, %s180
    %s182 = sphi 0, %s180
    %s183 = sphi 0, %s182
    %s197 = sphi 0, %s183
    %s201 = sphi 0, %s201
    %s203 = sphi 0, %s201
    %s204 = sphi 0, %s203
    %s218 = sphi 0, %s204
    %s222 = sphi 0, %s222
    %s224 = sphi 0, %s222
    %s225 = sphi 0, %s224
    %s239 = sphi 0, %s225
    %s247 = sphi 0, %s249
    %s250 = sphi 0, %s247
    %s251 = sphi 0, %s250
    %s267 = sphi 0, %s251
    %s275 = sphi 0, %s277
    %s278 = sphi 0, %s275
    %s279 = sphi 0, %s278
    %s295 = sphi 0, %s279
  $region4: #{tpu_custom_call.1} parent=0 // loop_header_branch
    %20 = sbr.rel (%p18) target = $region8
  $region5: #{tpu_custom_call.1} parent=0 // loop_body
    %s22 = ssub.s32 %s17, 1
    %s23 = ssub.s32 %s17, 2
    %s30 = sadd.s32 1, %s25
    %p31 = scmp.ge.s32.totalorder %s30, 4
    %s32 = scalar_select %p31, 0, %s30
    %s33 = sadd.s32 1, %s24
    %s34 = scalar_select %p31, %s33, %s24
    %p35 = scmp.ge.s32.totalorder %s34, 2
    %s36 = scalar_select %p35, 0, %s34
    %s37 = ssub.s32 %s24, %s36
    %s38 = ssub.s32 %s25, %s32
    %s39 = sor.u32 %s37, %s38
    %p40 = scmp.eq.s32.totalorder %s39, 0
    %s42 = sadd.s32 %s41, 1
    %s43 = scalar_select %p40, %s41, %s42
    %p46 = pneg %p40
    %p47 = scmp.eq.s32.totalorder %s17, 7
    %p48 = por %p46, %p47
    %p49 = scmp.ne.s32.totalorder %s41, %s44
    %p50 = scmp.eq.s32.totalorder %s17, 0
    %p51 = por %p49, %p50
    %p52 = scmp.ne.s32.totalorder %s41, %s44
    %p53 = scmp.eq.s32.totalorder %s22, 7
    %p54 = por %p52, %p53
    %p55 = scmp.ne.s32.totalorder %s44, %s45
    %p56 = scmp.eq.s32.totalorder %s22, 0
    %p57 = por %p55, %p56
    %p58 = scmp.ne.s32.totalorder %s44, %s45
    %p59 = scmp.eq.s32.totalorder %s23, 7
    %p60 = por %p58, %p59
    %p62 = scmp.ne.s32.totalorder %s45, %s61
    %p63 = scmp.eq.s32.totalorder %s23, 0
    %p64 = por %p62, %p63
    %s65 = ssub.s32 %s24, %s36
    %p66 = scmp.eq.s32.totalorder %s65, 0
    %s68 = sadd.s32 %s67, 1
    %s69 = scalar_select %p66, %s67, %s68
    %p72 = pneg %p66
    %p73 = scmp.eq.s32.totalorder %s17, 7
    %p74 = por %p72, %p73
    %p75 = scmp.ne.s32.totalorder %s67, %s70
    %p76 = scmp.eq.s32.totalorder %s17, 0
    %p77 = por %p75, %p76
    %p78 = scmp.ne.s32.totalorder %s67, %s70
    %p79 = scmp.eq.s32.totalorder %s22, 7
    %p80 = por %p78, %p79
    %p81 = scmp.ne.s32.totalorder %s70, %s71
    %p82 = scmp.eq.s32.totalorder %s22, 0
    %p83 = por %p81, %p82
    %p84 = scmp.ne.s32.totalorder %s70, %s71
    %p85 = scmp.eq.s32.totalorder %s23, 7
    %p86 = por %p84, %p85
    %p88 = scmp.ne.s32.totalorder %s71, %s87
    %p89 = scmp.eq.s32.totalorder %s23, 0
    %p90 = por %p88, %p89
    %s91 = ssub.s32 %s24, %s36
    %p92 = scmp.eq.s32.totalorder %s91, 0
    %s94 = sadd.s32 %s93, 1
    %s95 = scalar_select %p92, %s93, %s94
    %p98 = pneg %p92
    %p99 = scmp.eq.s32.totalorder %s17, 7
    %p100 = por %p98, %p99
    %p101 = scmp.ne.s32.totalorder %s93, %s96
    %p102 = scmp.eq.s32.totalorder %s17, 0
    %p103 = por %p101, %p102
    %p104 = scmp.ne.s32.totalorder %s93, %s96
    %p105 = scmp.eq.s32.totalorder %s22, 7
    %p106 = por %p104, %p105
    %p107 = scmp.ne.s32.totalorder %s96, %s97
    %p108 = scmp.eq.s32.totalorder %s22, 0
    %p109 = por %p107, %p108
    %p110 = scmp.ne.s32.totalorder %s96, %s97
    %p111 = scmp.eq.s32.totalorder %s23, 7
    %p112 = por %p110, %p111
    %p114 = scmp.ne.s32.totalorder %s97, %s113
    %p115 = scmp.eq.s32.totalorder %s23, 0
    %p116 = por %p114, %p115
    %s118 = sadd.s32 %s117, 1
    %p121 = scmp.eq.s32.totalorder %s17, 7
    %p122 = scmp.ne.s32.totalorder %s117, %s119
    %p123 = scmp.eq.s32.totalorder %s17, 0
    %p124 = por %p122, %p123
    %p125 = scmp.ne.s32.totalorder %s117, %s119
    %p126 = scmp.eq.s32.totalorder %s22, 7
    %p127 = por %p125, %p126
    %p128 = scmp.ne.s32.totalorder %s119, %s120
    %p129 = scmp.eq.s32.totalorder %s22, 0
    %p130 = por %p128, %p129
    %p131 = scmp.ne.s32.totalorder %s119, %s120
    %p132 = scmp.eq.s32.totalorder %s23, 7
    %p133 = por %p131, %p132
    %p135 = scmp.ne.s32.totalorder %s120, %s134
    %p136 = scmp.eq.s32.totalorder %s23, 0
    %p137 = por %p135, %p136
    %s139 = sadd.s32 %s138, 1
    %p142 = scmp.eq.s32.totalorder %s17, 7
    %p143 = scmp.ne.s32.totalorder %s138, %s140
    %p144 = scmp.eq.s32.totalorder %s17, 0
    %p145 = por %p143, %p144
    %p146 = scmp.ne.s32.totalorder %s138, %s140
    %p147 = scmp.eq.s32.totalorder %s22, 7
    %p148 = por %p146, %p147
    %p149 = scmp.ne.s32.totalorder %s140, %s141
    %p150 = scmp.eq.s32.totalorder %s22, 0
    %p151 = por %p149, %p150
    %p152 = scmp.ne.s32.totalorder %s140, %s141
    %p153 = scmp.eq.s32.totalorder %s23, 7
    %p154 = por %p152, %p153
    %p156 = scmp.ne.s32.totalorder %s141, %s155
    %p157 = scmp.eq.s32.totalorder %s23, 0
    %p158 = por %p156, %p157
    %s160 = sadd.s32 %s159, 1
    %p163 = scmp.eq.s32.totalorder %s17, 7
    %p164 = scmp.ne.s32.totalorder %s159, %s161
    %p165 = scmp.eq.s32.totalorder %s17, 0
    %p166 = por %p164, %p165
    %p167 = scmp.ne.s32.totalorder %s159, %s161
    %p168 = scmp.eq.s32.totalorder %s22, 7
    %p169 = por %p167, %p168
    %p170 = scmp.ne.s32.totalorder %s161, %s162
    %p171 = scmp.eq.s32.totalorder %s22, 0
    %p172 = por %p170, %p171
    %p173 = scmp.ne.s32.totalorder %s161, %s162
    %p174 = scmp.eq.s32.totalorder %s23, 7
    %p175 = por %p173, %p174
    %p177 = scmp.ne.s32.totalorder %s162, %s176
    %p178 = scmp.eq.s32.totalorder %s23, 0
    %p179 = por %p177, %p178
    %s181 = sadd.s32 %s180, 1
    %p184 = scmp.eq.s32.totalorder %s17, 7
    %p185 = scmp.ne.s32.totalorder %s180, %s182
    %p186 = scmp.eq.s32.totalorder %s17, 0
    %p187 = por %p185, %p186
    %p188 = scmp.ne.s32.totalorder %s180, %s182
    %p189 = scmp.eq.s32.totalorder %s22, 7
    %p190 = por %p188, %p189
    %p191 = scmp.ne.s32.totalorder %s182, %s183
    %p192 = scmp.eq.s32.totalorder %s22, 0
    %p193 = por %p191, %p192
    %p194 = scmp.ne.s32.totalorder %s182, %s183
    %p195 = scmp.eq.s32.totalorder %s23, 7
    %p196 = por %p194, %p195
    %p198 = scmp.ne.s32.totalorder %s183, %s197
    %p199 = scmp.eq.s32.totalorder %s23, 0
    %p200 = por %p198, %p199
    %s202 = sadd.s32 %s201, 1
    %p205 = scmp.eq.s32.totalorder %s17, 7
    %p206 = scmp.ne.s32.totalorder %s201, %s203
    %p207 = scmp.eq.s32.totalorder %s17, 0
    %p208 = por %p206, %p207
    %p209 = scmp.ne.s32.totalorder %s201, %s203
    %p210 = scmp.eq.s32.totalorder %s22, 7
    %p211 = por %p209, %p210
    %p212 = scmp.ne.s32.totalorder %s203, %s204
    %p213 = scmp.eq.s32.totalorder %s22, 0
    %p214 = por %p212, %p213
    %p215 = scmp.ne.s32.totalorder %s203, %s204
    %p216 = scmp.eq.s32.totalorder %s23, 7
    %p217 = por %p215, %p216
    %p219 = scmp.ne.s32.totalorder %s204, %s218
    %p220 = scmp.eq.s32.totalorder %s23, 0
    %p221 = por %p219, %p220
    %s223 = sadd.s32 %s222, 1
    %p226 = scmp.eq.s32.totalorder %s17, 7
    %p227 = scmp.ne.s32.totalorder %s222, %s224
    %p228 = scmp.eq.s32.totalorder %s17, 0
    %p229 = por %p227, %p228
    %p230 = scmp.ne.s32.totalorder %s222, %s224
    %p231 = scmp.eq.s32.totalorder %s22, 7
    %p232 = por %p230, %p231
    %p233 = scmp.ne.s32.totalorder %s224, %s225
    %p234 = scmp.eq.s32.totalorder %s22, 0
    %p235 = por %p233, %p234
    %p236 = scmp.ne.s32.totalorder %s224, %s225
    %p237 = scmp.eq.s32.totalorder %s23, 7
    %p238 = por %p236, %p237
    %p240 = scmp.ne.s32.totalorder %s225, %s239
    %p241 = scmp.eq.s32.totalorder %s23, 0
    %p242 = por %p240, %p241
    %s243 = ssub.s32 %s24, %s36
    %s244 = ssub.s32 %s25, %s32
    %s245 = sor.u32 %s243, %s244
    %p246 = scmp.eq.s32.totalorder %s245, 0
    %s248 = sadd.s32 %s247, 1
    %s249 = scalar_select %p246, %s247, %s248
    %p252 = pneg %p246
    %p253 = scmp.eq.s32.totalorder %s17, 7
    %p254 = por %p252, %p253
    %p255 = scmp.ne.s32.totalorder %s247, %s250
    %p256 = scmp.eq.s32.totalorder %s17, 0
    %p257 = por %p255, %p256
    %p258 = scmp.ne.s32.totalorder %s247, %s250
    %p259 = scmp.eq.s32.totalorder %s22, 7
    %p260 = por %p258, %p259
    %p261 = scmp.ne.s32.totalorder %s250, %s251
    %p262 = scmp.eq.s32.totalorder %s22, 0
    %p263 = por %p261, %p262
    %p264 = scmp.ne.s32.totalorder %s250, %s251
    %p265 = scmp.eq.s32.totalorder %s23, 7
    %p266 = por %p264, %p265
    %p268 = scmp.ne.s32.totalorder %s251, %s267
    %p269 = scmp.eq.s32.totalorder %s23, 0
    %p270 = por %p268, %p269
    %s271 = ssub.s32 %s24, %s36
    %s272 = ssub.s32 %s25, %s32
    %s273 = sor.u32 %s271, %s272
    %p274 = scmp.eq.s32.totalorder %s273, 0
    %s276 = sadd.s32 %s275, 1
    %s277 = scalar_select %p274, %s275, %s276
    %p280 = pneg %p274
    %p281 = scmp.eq.s32.totalorder %s17, 7
    %p282 = por %p280, %p281
    %p283 = scmp.ne.s32.totalorder %s275, %s278
    %p284 = scmp.eq.s32.totalorder %s17, 0
    %p285 = por %p283, %p284
    %p286 = scmp.ne.s32.totalorder %s275, %s278
    %p287 = scmp.eq.s32.totalorder %s22, 7
    %p288 = por %p286, %p287
    %p289 = scmp.ne.s32.totalorder %s278, %s279
    %p290 = scmp.eq.s32.totalorder %s22, 0
    %p291 = por %p289, %p290
    %p292 = scmp.ne.s32.totalorder %s278, %s279
    %p293 = scmp.eq.s32.totalorder %s23, 7
    %p294 = por %p292, %p293
    %p296 = scmp.ne.s32.totalorder %s279, %s295
    %p297 = scmp.eq.s32.totalorder %s23, 0
    %p298 = por %p296, %p297
    %p299 = scmp.le.s32.totalorder 1, %s17
    %p300 = scmp.lt.s32.totalorder %s17, 9
    %p301 = pnand %p299, %p300
    %p302 = pneg %p301
    // Predicated region
    $region9: #{tpu_custom_call.1} parent=5 // pred_check
      _
    $region10: #{tpu_custom_call.1} parent=5 // pred_check_branch
      %304 = sbr.rel (%p301) target = $region12
    $region11: #{tpu_custom_call.1} parent=5 // pred_region
      %s305 = ssub.s32 %s17, 1
      // Predicated region
      $region13: #{tpu_custom_call.1} parent=11 // pred_check
        %p306 = pneg %p130
      $region14: #{tpu_custom_call.1} parent=11 // pred_check_branch
        %308 = sbr.rel (%p306) target = $region16
      $region15: #{tpu_custom_call.1} parent=11 // pred_region
        _
      $region16: #{tpu_custom_call.1} parent=11 // pred_fallthru
        _
      // Predicated region
      $region17: #{tpu_custom_call.1} parent=11 // pred_check
        %p309 = pneg %p151
      $region18: #{tpu_custom_call.1} parent=11 // pred_check_branch
        %311 = sbr.rel (%p309) target = $region20
      $region19: #{tpu_custom_call.1} parent=11 // pred_region
        _
      $region20: #{tpu_custom_call.1} parent=11 // pred_fallthru
        _
      // Predicated region
      $region21: #{tpu_custom_call.1} parent=11 // pred_check
        %p312 = pneg %p172
      $region22: #{tpu_custom_call.1} parent=11 // pred_check_branch
        %314 = sbr.rel (%p312) target = $region24
      $region23: #{tpu_custom_call.1} parent=11 // pred_region
        _
      $region24: #{tpu_custom_call.1} parent=11 // pred_fallthru
        _
      // Predicated region
      $region25: #{tpu_custom_call.1} parent=11 // pred_check
        %p315 = pneg %p193
      $region26: #{tpu_custom_call.1} parent=11 // pred_check_branch
        %317 = sbr.rel (%p315) target = $region28
      $region27: #{tpu_custom_call.1} parent=11 // pred_region
        _
      $region28: #{tpu_custom_call.1} parent=11 // pred_fallthru
        _
      // Predicated region
      $region29: #{tpu_custom_call.1} parent=11 // pred_check
        %p318 = pneg %p214
      $region30: #{tpu_custom_call.1} parent=11 // pred_check_branch
        %320 = sbr.rel (%p318) target = $region32
      $region31: #{tpu_custom_call.1} parent=11 // pred_region
        _
      $region32: #{tpu_custom_call.1} parent=11 // pred_fallthru
        _
      // Predicated region
      $region33: #{tpu_custom_call.1} parent=11 // pred_check
        %p321 = pneg %p235
      $region34: #{tpu_custom_call.1} parent=11 // pred_check_branch
        %323 = sbr.rel (%p321) target = $region36
      $region35: #{tpu_custom_call.1} parent=11 // pred_region
        _
      $region36: #{tpu_custom_call.1} parent=11 // pred_fallthru
        _
    $region12: #{tpu_custom_call.1} parent=5 // pred_fallthru
      _
    %p324 = scmp.lt.s32.totalorder %s17, 8
    // Predicated region
    $region37: #{tpu_custom_call.1} parent=5 // pred_check
      %p325 = pneg %p324
    $region38: #{tpu_custom_call.1} parent=5 // pred_check_branch
      %327 = sbr.rel (%p325) target = $region40
    $region39: #{tpu_custom_call.1} parent=5 // pred_region
      // Predicated region
      $region41: #{tpu_custom_call.1} parent=39 // pred_check
        %p328 = pneg %p51
      $region42: #{tpu_custom_call.1} parent=39 // pred_check_branch
        %330 = sbr.rel (%p328) target = $region44
      $region43: #{tpu_custom_call.1} parent=39 // pred_region
        %s331 = smul.u32 8, %s25
        %p332 = scmp.lt.s32.totalorder %s24, 1
        %s333 = scalar_select %p332, %s24, 1
        %p334 = scmp.lt.s32.totalorder %s331, 31
        %s335 = scalar_select %p334, %s331, 31
        %s336 = smul.addr %s333, 32
        %s337 = sadd.s32 %s335, %s336
        %s338 = smul.addr %s337, 4
        %s339 = scalar_lea.vmem %s0, %s338
        %s340 = smul.u32 8, %s25
      $region44: #{tpu_custom_call.1} parent=39 // pred_fallthru
        _
      // Predicated region
      $region45: #{tpu_custom_call.1} parent=39 // pred_check
        %p341 = pneg %p77
      $region46: #{tpu_custom_call.1} parent=39 // pred_check_branch
        %343 = sbr.rel (%p341) target = $region48
      $region47: #{tpu_custom_call.1} parent=39 // pred_region
        %p344 = scmp.lt.s32.totalorder %s24, 1
        %s345 = scalar_select %p344, %s24, 1
        %s346 = scalar_lea.vmem %s1, %s345
      $region48: #{tpu_custom_call.1} parent=39 // pred_fallthru
        _
      // Predicated region
      $region49: #{tpu_custom_call.1} parent=39 // pred_check
        %p347 = pneg %p103
      $region50: #{tpu_custom_call.1} parent=39 // pred_check_branch
        %349 = sbr.rel (%p347) target = $region52
      $region51: #{tpu_custom_call.1} parent=39 // pred_region
        %p350 = scmp.lt.s32.totalorder %s24, 1
        %s351 = scalar_select %p350, %s24, 1
        %s352 = scalar_lea.vmem %s2, %s351
      $region52: #{tpu_custom_call.1} parent=39 // pred_fallthru
        _
    $region40: #{tpu_custom_call.1} parent=5 // pred_fallthru
      _
    %p353 = scmp.le.s32.totalorder 1, %s17
    %p354 = scmp.lt.s32.totalorder %s17, 9
    %p355 = pnand %p353, %p354
    %p356 = pneg %p355
    // Predicated region
    $region53: #{tpu_custom_call.1} parent=5 // pred_check
      _
    $region54: #{tpu_custom_call.1} parent=5 // pred_check_branch
      %358 = sbr.rel (%p355) target = $region56
    $region55: #{tpu_custom_call.1} parent=5 // pred_region
      %s359 = ssub.s32 %s17, 1
      %s360 = smul.u32 8, %s27
      %p361 = scmp.lt.s32.totalorder %s26, 1
      %s362 = scalar_select %p361, %s26, 1
      %p363 = scmp.lt.s32.totalorder %s360, 31
      %s364 = scalar_select %p363, %s360, 31
      %s365 = smul.addr %s362, 32
      %s366 = sadd.s32 %s364, %s365
      %s367 = smul.addr %s366, 4
      %s368 = scalar_lea.vmem %s0, %s367
      %p369 = pneg %p57
      %p370 = pneg %p54
      %p371 = scmp.lt.s32.totalorder %s26, 1
      %s372 = scalar_select %p371, %s26, 1
      %s373 = scalar_lea.vmem %s1, %s372
      %p374 = pneg %p83
      %p375 = pneg %p80
      %p376 = scmp.lt.s32.totalorder %s26, 1
      %s377 = scalar_select %p376, %s26, 1
      %s378 = scalar_lea.vmem %s2, %s377
      %p379 = pneg %p109
      %p380 = pneg %p106
      %p381 = pneg %p130
      %p382 = pneg %p127
      %p383 = pneg %p151
      %p384 = pneg %p148
      %p385 = pneg %p172
      %p386 = pneg %p169
      %p387 = pneg %p193
      %p388 = pneg %p190
      %p389 = pneg %p214
      %p390 = pneg %p211
      %p391 = pneg %p235
      %p392 = pneg %p232
      %p393 = pneg %p263
      %p394 = pneg %p260
      %s395 = smul.u32 8, %s27
      %p396 = scmp.lt.s32.totalorder %s26, 1
      %s397 = scalar_select %p396, %s26, 1
      %p398 = scmp.lt.s32.totalorder %s395, 31
      %s399 = scalar_select %p398, %s395, 31
      %s400 = smul.addr %s397, 32
      %s401 = sadd.s32 %s399, %s400
      %s402 = smul.addr %s401, 4
      %s403 = scalar_lea.vmem %s9, %s402
      %p404 = pneg %p291
      %p405 = pneg %p288
      %s406 = smul.u32 8, %s27
      %p407 = scmp.lt.s32.totalorder %s26, 1
      %s408 = scalar_select %p407, %s26, 1
      %p409 = scmp.lt.s32.totalorder %s406, 31
      %s410 = scalar_select %p409, %s406, 31
      %s411 = smul.addr %s408, 32
      %s412 = sadd.s32 %s410, %s411
      %s413 = smul.addr %s412, 4
      %s414 = scalar_lea.vmem %s10, %s413
      %s415 = smul.u32 8, %s27
      %p416 = scmp.lt.s32.totalorder %s26, 1
      %s417 = scalar_select %p416, %s26, 1
      %p418 = scmp.lt.s32.totalorder %s415, 31
      %s419 = scalar_select %p418, %s415, 31
      %s420 = smul.addr %s417, 32
      %s421 = sadd.s32 %s419, %s420
      %s422 = smul.addr %s421, 4
      %s423 = scalar_lea.vmem %s0, %s422
      %s424 = smul.u32 8, %s27
      %p425 = scmp.lt.s32.totalorder %s26, 1
      %s426 = scalar_select %p425, %s26, 1
      %s427 = scalar_lea.vmem %s1, %s426
      %p428 = scmp.lt.s32.totalorder %s26, 1
      %s429 = scalar_select %p428, %s26, 1
      %s430 = scalar_lea.vmem %s2, %s429
      %s431 = smul.u32 8, %s27
      %p432 = scmp.lt.s32.totalorder %s26, 1
      %s433 = scalar_select %p432, %s26, 1
      %p434 = scmp.lt.s32.totalorder %s431, 31
      %s435 = scalar_select %p434, %s431, 31
      %s436 = smul.addr %s433, 32
      %s437 = sadd.s32 %s435, %s436
      %s438 = smul.addr %s437, 4
      %s439 = scalar_lea.vmem %s9, %s438
      %s440 = smul.u32 8, %s27
      %s441 = smul.u32 8, %s27
      %p442 = scmp.lt.s32.totalorder %s26, 1
      %s443 = scalar_select %p442, %s26, 1
      %p444 = scmp.lt.s32.totalorder %s441, 31
      %s445 = scalar_select %p444, %s441, 31
      %s446 = smul.addr %s443, 32
      %s447 = sadd.s32 %s445, %s446
      %s448 = smul.addr %s447, 4
      %s449 = scalar_lea.vmem %s10, %s448
      %s450 = smul.u32 8, %s27
      %v452 = vld [vmem:[%s423] sm:$0xf]
      %v453 = vld [vmem:[%s423 + $0x4] sm:$0xf]
      %v454 = vld [vmem:[%s423 + $0x8] sm:$0xf]
      %v455 = vld [vmem:[%s423 + $0xc] sm:$0xf]
      %v456 = vld [vmem:[%s423 + $0x10] sm:$0xf]
      %v457 = vld [vmem:[%s423 + $0x14] sm:$0xf]
      %v458 = vld [vmem:[%s423 + $0x18] sm:$0xf]
      %v459 = vld [vmem:[%s423 + $0x1c] sm:$0xf]
      %v460 = vld [vmem:[%s3] sm:$0xf]
      %v461 = vld [vmem:[%s427] sm:$0x1]
      %v463 = vlaneseq
      %v464 = vshrl.u32 %v463, 7
      %v465 = vsub.s32 0, %v464
      %v466 = vrot.slane %v461, %v465
      %v476 = vunpack.c.l.b16 %v452
      %v477 = vunpack.c.l.b16 %v453
      %v478 = vunpack.c.l.b16 %v454
      %v479 = vunpack.c.l.b16 %v455
      %v480 = vunpack.c.l.b16 %v456
      %v481 = vunpack.c.l.b16 %v457
      %v482 = vunpack.c.l.b16 %v458
      %v483 = vunpack.c.l.b16 %v459
      %v484 = vpack.c.b16 %v477, %v476
      %v485 = vpack.c.b16 %v479, %v478
      %v486 = vpack.c.b16 %v481, %v480
      %v487 = vpack.c.b16 %v483, %v482
      %vm488 = vcmask 64512
      %v490 = vsel %vm488, %v484, 0
      %v493 = vsel %vm488, %v485, 0
      %v496 = vsel %vm488, %v486, 0
      %v499 = vsel %vm488, %v487, 0
      %vm501 = vcmask 1043456
      %v503 = vsel %vm501, %v460, 0
      %505 = vmatprep.subr.bf16.mxu0 0
      %506 = vmatpush1.bf16.msra.mxu0 0
      %507 = vmatprep.subr.bf16.mxu0 0
      %508 = vmatpush1.bf16.msra.mxu0 0
      %509 = vmatprep.subr.bf16.mxu0 0
      %510 = vmatpush1.bf16.msra.mxu0 0
      %511 = vmatprep.subr.bf16.mxu0 0
      %512 = vmatpush1.bf16.msra.mxu0 0
      %513 = vmatprep.subr.bf16.mxu0 0
      %514 = vmatpush1.bf16.msra.mxu0 0
      %515 = vmatprep.subr.bf16.mxu0 0
      %516 = vmatpush1.bf16.msra.mxu0 0
      %517 = vmatprep.subr.bf16.mxu0 0
      %518 = vmatpush1.bf16.msra.mxu0 0
      %519 = vmatprep.subr.bf16.mxu0 0
      %520 = vmatpush1.bf16.msra.mxu0 %v503
      %521 = vmatprep.subr.bf16.mxu0 0
      %522 = vmatpush2.bf16.msra.mxu0 0
      %523 = vmatprep.subr.bf16.mxu0 0
      %524 = vmatpush2.bf16.msra.mxu0 0
      %525 = vmatprep.subr.bf16.mxu0 0
      %526 = vmatpush2.bf16.msra.mxu0 0
      %527 = vmatprep.subr.bf16.mxu0 0
      %528 = vmatpush2.bf16.msra.mxu0 0
      %529 = vmatprep.subr.bf16.mxu0 0
      %530 = vmatpush2.bf16.msra.mxu0 0
      %531 = vmatprep.subr.bf16.mxu0 0
      %532 = vmatpush2.bf16.msra.mxu0 0
      %533 = vmatprep.subr.bf16.mxu0 0
      %534 = vmatpush2.bf16.msra.mxu0 0
      %535 = vmatprep.subr.bf16.mxu0 0
      %536 = vmatpush2.bf16.msra.mxu0 0
      %537 = vmatprep.mubr.bf16.mxu0 0
      %538 = vmatmul.mubr.bf16.gmra.mxu0 %v490
      %v539 = vpop.f32.mrf.mxu0
      %v540 = vadd.f32 %v466, %v539
      %v541 = vpop.f32.mrf.mxu0
      %v542 = vpop.f32.mrf.mxu0
      %v543 = vadd.f32 %v466, %v542
      %v544 = vpop.f32.mrf.mxu0
      %545 = vmatprep.mubr.bf16.mxu0 0
      %546 = vmatmul.mubr.bf16.gmra.mxu0 %v493
      %v547 = vpop.f32.mrf.mxu0
      %v548 = vadd.f32 %v466, %v547
      %v549 = vpop.f32.mrf.mxu0
      %v550 = vpop.f32.mrf.mxu0
      %v551 = vadd.f32 %v466, %v550
      %v552 = vpop.f32.mrf.mxu0
      %553 = vmatprep.mubr.bf16.mxu0 0
      %554 = vmatmul.mubr.bf16.gmra.mxu0 %v496
      %v555 = vpop.f32.mrf.mxu0
      %v556 = vadd.f32 %v466, %v555
      %v557 = vpop.f32.mrf.mxu0
      %v558 = vpop.f32.mrf.mxu0
      %v559 = vadd.f32 %v466, %v558
      %v560 = vpop.f32.mrf.mxu0
      %561 = vmatprep.mubr.bf16.mxu0 0
      %562 = vmatmul.mubr.bf16.gmra.mxu0 %v499
      %v563 = vpop.f32.mrf.mxu0
      %v564 = vadd.f32 %v466, %v563
      %v565 = vpop.f32.mrf.mxu0
      %v566 = vpop.f32.mrf.mxu0
      %v567 = vadd.f32 %v466, %v566
      %v568 = vpop.f32.mrf.mxu0
      %569 = vdwg.mxu0
      %v570 = vld [vmem:[%s4] sm:$0x1]
      %v572 = vlaneseq
      %v573 = vshrl.u32 %v572, 7
      %v574 = vsub.s32 0, %v573
      %v575 = vrot.slane %v570, %v574
      %v577 = vadd.f32 %v540, %v575
      %v578 = vadd.f32 %v543, %v575
      %v579 = vadd.f32 %v548, %v575
      %v580 = vadd.f32 %v551, %v575
      %v581 = vadd.f32 %v556, %v575
      %v582 = vadd.f32 %v559, %v575
      %v583 = vadd.f32 %v564, %v575
      %v584 = vadd.f32 %v567, %v575
      %v585 = vpack.c.bf16 %v578, %v577
      %v586 = vpack.c.bf16 %v580, %v579
      %v587 = vpack.c.bf16 %v582, %v581
      %v588 = vpack.c.bf16 %v584, %v583
      %v589 = vld [vmem:[%s5] sm:$0xf]
      %v590 = vld [vmem:[%s5 + $0x4] sm:$0xf]
      %v591 = vld [vmem:[%s5 + $0x8] sm:$0xf]
      %v592 = vld [vmem:[%s5 + $0xc] sm:$0xf]
      %v593 = vld [vmem:[%s6] sm:$0x1]
      %v595 = vlaneseq
      %v596 = vshrl.u32 %v595, 7
      %v597 = vsub.s32 0, %v596
      %v598 = vrot.slane %v593, %v597
      %v604 = vunpack.c.l.b16 %v589
      %v605 = vunpack.c.l.b16 %v590
      %v606 = vunpack.c.l.b16 %v591
      %v607 = vunpack.c.l.b16 %v592
      %v608 = vpack.c.b16 %v605, %v604
      %v609 = vpack.c.b16 %v607, %v606
      %vm612 = vcmask 261120
      %v614 = vsel %vm612, %v585, 0
      %v617 = vsel %vm612, %v586, 0
      %v620 = vsel %vm612, %v587, 0
      %v623 = vsel %vm612, %v588, 0
      %625 = vmatprep.subr.bf16.mxu0 0
      %626 = vmatpush1.bf16.msra.mxu0 0
      %627 = vmatprep.subr.bf16.mxu0 0
      %628 = vmatpush1.bf16.msra.mxu0 0
      %629 = vmatprep.subr.bf16.mxu0 0
      %630 = vmatpush1.bf16.msra.mxu0 0
      %631 = vmatprep.subr.bf16.mxu0 0
      %632 = vmatpush1.bf16.msra.mxu0 0
      %633 = vmatprep.subr.bf16.mxu0 0
      %634 = vmatpush1.bf16.msra.mxu0 0
      %635 = vmatprep.subr.bf16.mxu0 0
      %636 = vmatpush1.bf16.msra.mxu0 0
      %637 = vmatprep.subr.bf16.mxu0 0
      %638 = vmatpush1.bf16.msra.mxu0 %v609
      %639 = vmatprep.subr.bf16.mxu0 0
      %640 = vmatpush1.bf16.msra.mxu0 %v608
      %641 = vmatprep.subr.bf16.mxu0 0
      %642 = vmatpush2.bf16.msra.mxu0 0
      %643 = vmatprep.subr.bf16.mxu0 0
      %644 = vmatpush2.bf16.msra.mxu0 0
      %645 = vmatprep.subr.bf16.mxu0 0
      %646 = vmatpush2.bf16.msra.mxu0 0
      %647 = vmatprep.subr.bf16.mxu0 0
      %648 = vmatpush2.bf16.msra.mxu0 0
      %649 = vmatprep.subr.bf16.mxu0 0
      %650 = vmatpush2.bf16.msra.mxu0 0
      %651 = vmatprep.subr.bf16.mxu0 0
      %652 = vmatpush2.bf16.msra.mxu0 0
      %653 = vmatprep.subr.bf16.mxu0 0
      %654 = vmatpush2.bf16.msra.mxu0 0
      %655 = vmatprep.subr.bf16.mxu0 0
      %656 = vmatpush2.bf16.msra.mxu0 0
      %657 = vmatprep.mubr.bf16.mxu0 0
      %658 = vmatmul.mubr.bf16.gmra.mxu0 %v614
      %v659 = vpop.f32.mrf.mxu0
      %v660 = vadd.f32 %v598, %v659
      %v661 = vpop.f32.mrf.mxu0
      %v662 = vpop.f32.mrf.mxu0
      %v663 = vadd.f32 %v598, %v662
      %v664 = vpop.f32.mrf.mxu0
      %665 = vmatprep.mubr.bf16.mxu0 0
      %666 = vmatmul.mubr.bf16.gmra.mxu0 %v617
      %v667 = vpop.f32.mrf.mxu0
      %v668 = vadd.f32 %v598, %v667
      %v669 = vpop.f32.mrf.mxu0
      %v670 = vpop.f32.mrf.mxu0
      %v671 = vadd.f32 %v598, %v670
      %v672 = vpop.f32.mrf.mxu0
      %673 = vmatprep.mubr.bf16.mxu0 0
      %674 = vmatmul.mubr.bf16.gmra.mxu0 %v620
      %v675 = vpop.f32.mrf.mxu0
      %v676 = vadd.f32 %v598, %v675
      %v677 = vpop.f32.mrf.mxu0
      %v678 = vpop.f32.mrf.mxu0
      %v679 = vadd.f32 %v598, %v678
      %v680 = vpop.f32.mrf.mxu0
      %681 = vmatprep.mubr.bf16.mxu0 0
      %682 = vmatmul.mubr.bf16.gmra.mxu0 %v623
      %v683 = vpop.f32.mrf.mxu0
      %v684 = vadd.f32 %v598, %v683
      %v685 = vpop.f32.mrf.mxu0
      %v686 = vpop.f32.mrf.mxu0
      %v687 = vadd.f32 %v598, %v686
      %v688 = vpop.f32.mrf.mxu0
      %689 = vdwg.mxu0
      %v690 = vld [vmem:[%s7] sm:$0xf]
      %v691 = vld [vmem:[%s430] sm:$0x1]
      %v693 = vlaneseq
      %v694 = vshrl.u32 %v693, 7
      %v695 = vsub.s32 0, %v694
      %v696 = vrot.slane %v691, %v695
      %v699 = vsel %vm501, %v690, 0
      %701 = vmatprep.subr.bf16.mxu0 0
      %702 = vmatpush1.bf16.msra.mxu0 0
      %703 = vmatprep.subr.bf16.mxu0 0
      %704 = vmatpush1.bf16.msra.mxu0 0
      %705 = vmatprep.subr.bf16.mxu0 0
      %706 = vmatpush1.bf16.msra.mxu0 0
      %707 = vmatprep.subr.bf16.mxu0 0
      %708 = vmatpush1.bf16.msra.mxu0 0
      %709 = vmatprep.subr.bf16.mxu0 0
      %710 = vmatpush1.bf16.msra.mxu0 0
      %711 = vmatprep.subr.bf16.mxu0 0
      %712 = vmatpush1.bf16.msra.mxu0 0
      %713 = vmatprep.subr.bf16.mxu0 0
      %714 = vmatpush1.bf16.msra.mxu0 0
      %715 = vmatprep.subr.bf16.mxu0 0
      %716 = vmatpush1.bf16.msra.mxu0 %v699
      %717 = vmatprep.subr.bf16.mxu0 0
      %718 = vmatpush2.bf16.msra.mxu0 0
      %719 = vmatprep.subr.bf16.mxu0 0
      %720 = vmatpush2.bf16.msra.mxu0 0
      %721 = vmatprep.subr.bf16.mxu0 0
      %722 = vmatpush2.bf16.msra.mxu0 0
      %723 = vmatprep.subr.bf16.mxu0 0
      %724 = vmatpush2.bf16.msra.mxu0 0
      %725 = vmatprep.subr.bf16.mxu0 0
      %726 = vmatpush2.bf16.msra.mxu0 0
      %727 = vmatprep.subr.bf16.mxu0 0
      %728 = vmatpush2.bf16.msra.mxu0 0
      %729 = vmatprep.subr.bf16.mxu0 0
      %730 = vmatpush2.bf16.msra.mxu0 0
      %731 = vmatprep.subr.bf16.mxu0 0
      %732 = vmatpush2.bf16.msra.mxu0 0
      %733 = vmatprep.mubr.bf16.mxu0 0
      %734 = vmatmul.mubr.bf16.gmra.mxu0 %v490
      %v735 = vpop.f32.mrf.mxu0
      %v736 = vadd.f32 %v696, %v735
      %v737 = vpop.f32.mrf.mxu0
      %v738 = vpop.f32.mrf.mxu0
      %v739 = vadd.f32 %v696, %v738
      %v740 = vpop.f32.mrf.mxu0
      %741 = vmatprep.mubr.bf16.mxu0 0
      %742 = vmatmul.mubr.bf16.gmra.mxu0 %v493
      %v743 = vpop.f32.mrf.mxu0
      %v744 = vadd.f32 %v696, %v743
      %v745 = vpop.f32.mrf.mxu0
      %v746 = vpop.f32.mrf.mxu0
      %v747 = vadd.f32 %v696, %v746
      %v748 = vpop.f32.mrf.mxu0
      %749 = vmatprep.mubr.bf16.mxu0 0
      %750 = vmatmul.mubr.bf16.gmra.mxu0 %v496
      %v751 = vpop.f32.mrf.mxu0
      %v752 = vadd.f32 %v696, %v751
      %v753 = vpop.f32.mrf.mxu0
      %v754 = vpop.f32.mrf.mxu0
      %v755 = vadd.f32 %v696, %v754
      %v756 = vpop.f32.mrf.mxu0
      %757 = vmatprep.mubr.bf16.mxu0 0
      %758 = vmatmul.mubr.bf16.gmra.mxu0 %v499
      %v759 = vpop.f32.mrf.mxu0
      %v760 = vadd.f32 %v696, %v759
      %v761 = vpop.f32.mrf.mxu0
      %v762 = vpop.f32.mrf.mxu0
      %v763 = vadd.f32 %v696, %v762
      %v764 = vpop.f32.mrf.mxu0
      %765 = vdwg.mxu0
      %v766 = vld [vmem:[%s8] sm:$0x1]
      %v768 = vlaneseq
      %v769 = vshrl.u32 %v768, 7
      %v770 = vsub.s32 0, %v769
      %v771 = vrot.slane %v766, %v770
      %v773 = vadd.f32 %v736, %v771
      %v774 = vadd.f32 %v739, %v771
      %v775 = vadd.f32 %v744, %v771
      %v776 = vadd.f32 %v747, %v771
      %v777 = vadd.f32 %v752, %v771
      %v778 = vadd.f32 %v755, %v771
      %v779 = vadd.f32 %v760, %v771
      %v780 = vadd.f32 %v763, %v771
      %v781 = vpack.c.bf16 %v663, %v660
      %v782 = vpack.c.bf16 %v671, %v668
      %v783 = vpack.c.bf16 %v679, %v676
      %v784 = vpack.c.bf16 %v687, %v684
      %v789 = vunpack.c.l.b16 %v781
      %v790 = vunpack.c.h.b16 %v781
      %v791 = vunpack.c.l.b16 %v782
      %v792 = vunpack.c.h.b16 %v782
      %v793 = vunpack.c.l.b16 %v783
      %v794 = vunpack.c.h.b16 %v783
      %v795 = vunpack.c.l.b16 %v784
      %v796 = vunpack.c.h.b16 %v784
      %v797 = vpack.c.b16 %v789, %v789
      %v798 = vpack.c.b16 %v790, %v790
      %v799 = vpack.c.b16 %v791, %v791
      %v800 = vpack.c.b16 %v792, %v792
      %v801 = vpack.c.b16 %v793, %v793
      %v802 = vpack.c.b16 %v794, %v794
      %v803 = vpack.c.b16 %v795, %v795
      %v804 = vpack.c.b16 %v796, %v796
      %vm813 = vcmask 257024
      %814 = vst.msk [vmem:[%s439] sm:$0xf] %vm813, %v797
      %815 = vst.msk [vmem:[%s439 + $0x4] sm:$0xf] %vm813, %v798
      %816 = vst.msk [vmem:[%s439 + $0x8] sm:$0xf] %vm813, %v799
      %817 = vst.msk [vmem:[%s439 + $0xc] sm:$0xf] %vm813, %v800
      %818 = vst.msk [vmem:[%s439 + $0x10] sm:$0xf] %vm813, %v801
      %819 = vst.msk [vmem:[%s439 + $0x14] sm:$0xf] %vm813, %v802
      %820 = vst.msk [vmem:[%s439 + $0x18] sm:$0xf] %vm813, %v803
      %821 = vst.msk [vmem:[%s439 + $0x1c] sm:$0xf] %vm813, %v804
      %v822 = vpack.c.bf16 %v774, %v773
      %v823 = vpack.c.bf16 %v776, %v775
      %v824 = vpack.c.bf16 %v778, %v777
      %v825 = vpack.c.bf16 %v780, %v779
      %v830 = vunpack.c.l.b16 %v822
      %v831 = vunpack.c.h.b16 %v822
      %v832 = vunpack.c.l.b16 %v823
      %v833 = vunpack.c.h.b16 %v823
      %v834 = vunpack.c.l.b16 %v824
      %v835 = vunpack.c.h.b16 %v824
      %v836 = vunpack.c.l.b16 %v825
      %v837 = vunpack.c.h.b16 %v825
      %v838 = vpack.c.b16 %v830, %v830
      %v839 = vpack.c.b16 %v831, %v831
      %v840 = vpack.c.b16 %v832, %v832
      %v841 = vpack.c.b16 %v833, %v833
      %v842 = vpack.c.b16 %v834, %v834
      %v843 = vpack.c.b16 %v835, %v835
      %v844 = vpack.c.b16 %v836, %v836
      %v845 = vpack.c.b16 %v837, %v837
      %854 = vst.msk [vmem:[%s449] sm:$0xf] %vm813, %v838
      %855 = vst.msk [vmem:[%s449 + $0x4] sm:$0xf] %vm813, %v839
      %856 = vst.msk [vmem:[%s449 + $0x8] sm:$0xf] %vm813, %v840
      %857 = vst.msk [vmem:[%s449 + $0xc] sm:$0xf] %vm813, %v841
      %858 = vst.msk [vmem:[%s449 + $0x10] sm:$0xf] %vm813, %v842
      %859 = vst.msk [vmem:[%s449 + $0x14] sm:$0xf] %vm813, %v843
      %860 = vst.msk [vmem:[%s449 + $0x18] sm:$0xf] %vm813, %v844
      %861 = vst.msk [vmem:[%s449 + $0x1c] sm:$0xf] %vm813, %v845
      %s862 = smul.u32 8, %s27
      %p863 = scmp.lt.s32.totalorder %s26, 1
      %s864 = scalar_select %p863, %s26, 1
      %p865 = scmp.lt.s32.totalorder %s862, 31
      %s866 = scalar_select %p865, %s862, 31
      %s867 = smul.addr %s864, 32
      %s868 = sadd.s32 %s866, %s867
      %s869 = smul.addr %s868, 4
      %s870 = scalar_lea.vmem %s9, %s869
      %s871 = smul.u32 8, %s27
      %p872 = scmp.lt.s32.totalorder %s26, 1
      %s873 = scalar_select %p872, %s26, 1
      %p874 = scmp.lt.s32.totalorder %s871, 31
      %s875 = scalar_select %p874, %s871, 31
      %s876 = smul.addr %s873, 32
      %s877 = sadd.s32 %s875, %s876
      %s878 = smul.addr %s877, 4
      %s879 = scalar_lea.vmem %s10, %s878
      // Predicated region
      $region57: #{tpu_custom_call.1} parent=55 // pred_check
        %p880 = pneg %p260
      $region58: #{tpu_custom_call.1} parent=55 // pred_check_branch
        %882 = sbr.rel (%p880) target = $region60
      $region59: #{tpu_custom_call.1} parent=55 // pred_region
        %s883 = smul.u32 8, %s27
      $region60: #{tpu_custom_call.1} parent=55 // pred_fallthru
        _
      // Predicated region
      $region61: #{tpu_custom_call.1} parent=55 // pred_check
        %p884 = pneg %p288
      $region62: #{tpu_custom_call.1} parent=55 // pred_check_branch
        %886 = sbr.rel (%p884) target = $region64
      $region63: #{tpu_custom_call.1} parent=55 // pred_region
        %s887 = smul.u32 8, %s27
      $region64: #{tpu_custom_call.1} parent=55 // pred_fallthru
        _
    $region56: #{tpu_custom_call.1} parent=5 // pred_fallthru
      _
    %p888 = scmp.le.s32.totalorder 2, %s17
    // Predicated region
    $region65: #{tpu_custom_call.1} parent=5 // pred_check
      %p889 = pneg %p888
    $region66: #{tpu_custom_call.1} parent=5 // pred_check_branch
      %891 = sbr.rel (%p889) target = $region68
    $region67: #{tpu_custom_call.1} parent=5 // pred_region
      %s892 = ssub.s32 %s17, 2
      // Predicated region
      $region69: #{tpu_custom_call.1} parent=67 // pred_check
        %p893 = pneg %p266
      $region70: #{tpu_custom_call.1} parent=67 // pred_check_branch
        %895 = sbr.rel (%p893) target = $region72
      $region71: #{tpu_custom_call.1} parent=67 // pred_region
        %s896 = smul.u32 8, %s29
        %p897 = scmp.lt.s32.totalorder %s28, 1
        %s898 = scalar_select %p897, %s28, 1
        %p899 = scmp.lt.s32.totalorder %s896, 31
        %s900 = scalar_select %p899, %s896, 31
        %s901 = smul.addr %s898, 32
        %s902 = sadd.s32 %s900, %s901
        %s903 = smul.addr %s902, 4
        %s904 = scalar_lea.vmem %s9, %s903
      $region72: #{tpu_custom_call.1} parent=67 // pred_fallthru
        _
      // Predicated region
      $region73: #{tpu_custom_call.1} parent=67 // pred_check
        %p905 = pneg %p294
      $region74: #{tpu_custom_call.1} parent=67 // pred_check_branch
        %907 = sbr.rel (%p905) target = $region76
      $region75: #{tpu_custom_call.1} parent=67 // pred_region
        %s908 = smul.u32 8, %s29
        %p909 = scmp.lt.s32.totalorder %s28, 1
        %s910 = scalar_select %p909, %s28, 1
        %p911 = scmp.lt.s32.totalorder %s908, 31
        %s912 = scalar_select %p911, %s908, 31
        %s913 = smul.addr %s910, 32
        %s914 = sadd.s32 %s912, %s913
        %s915 = smul.addr %s914, 4
        %s916 = scalar_lea.vmem %s10, %s915
      $region76: #{tpu_custom_call.1} parent=67 // pred_fallthru
        _
    $region68: #{tpu_custom_call.1} parent=5 // pred_fallthru
      _
  $region6: #{tpu_custom_call.1} parent=0 // loop_footer
    %s21 = sadd.s32 1, %s17
  $region7: #{tpu_custom_call.1} parent=0 // loop_footer_branch
    %16 = sbr.rel target = $region3
  $region8: #{tpu_custom_call.1} parent=0 // loop_exit
    _

</llo_original>
